<compile_context>
chip_gen: v7x
topology: tpu7x:2x2x1
jax: 0.10.0
libtpu: 0.0.40
codegen_flags: <defaults>
</compile_context>

<pallas_src>
import functools

import jax
import jax.numpy as jnp
from jax import lax
from jax.experimental import pallas as pl
from jax.experimental.pallas import tpu as pltpu

ALPHA = 0.05
LANES = 128   # lane width (last dim of every tile)
TM = 4096     # rows per grid step -> 2 MiB f32 / stream / step (sweepable: 2048/4096/8192)


def _num_tensorcores():
    """Width of the leading 'parallel' grid axis: 2 only on dual-TensorCore chips."""
    try:
        kind = jax.devices()[0].device_kind.lower()
    except Exception:
        return 1
    for tag in ("v4", "v5p", "7x", "v7"):
        if tag in kind:
            return 2
    return 1


def _bce_blur_kernel(pred_ref, true_ref, out_ref, acc_ref, *,
                     rows, nblocks, tm, inv_alpha, needs_row_mask, has_phantom):
    c = pl.program_id(0)            # core axis ("parallel")
    s = pl.program_id(1)            # step axis ("arbitrary" / reduction)
    spc = pl.num_programs(1)        # steps per core

    @pl.when(s == 0)
    def _():
        acc_ref[...] = jnp.zeros_like(acc_ref)

    # Logical block index (the index_map may clamp the DMA for phantom blocks, but
    # masking / skipping is always driven by the logical position).
    block_row = c * spc + s

    def compute():
        x = pred_ref[...].astype(jnp.float32)
        t = true_ref[...].astype(jnp.float32)

        # One shared transcendental feeds both the softplus term and the sigmoid.
        e = jnp.exp(-jnp.abs(x))
        # BCEWithLogitsLoss(reduction='none'), numerically stable form:
        #   loss = max(x, 0) - x*t + log(1 + exp(-|x|))
        loss = jnp.maximum(x, 0.0) - x * t + jnp.log1p(e)

        # sigmoid(x) reconstructed exactly from e = exp(-|x|):
        #   x >= 0: 1/(1+e)     x < 0: e/(1+e)
        # NOTE: keep the exact divide; pl.reciprocal(approx=True) error (~2^-12) is
        # amplified ~inv_alpha (~20x) through the exp() below.
        r = 1.0 / (1.0 + e)
        p = jnp.where(x >= 0, r, e * r)

        alpha_factor = 1.0 - jnp.exp((p - t - 1.0) * inv_alpha)  # inv_alpha = 1/(alpha+1e-4)
        loss = loss * alpha_factor

        def accumulate(contrib):
            # (tm,128) -> (tm//8, 8, 128) splits sublanes at tile boundaries (relabel,
            # no copy); the axis-0 sum is a pure vreg-add tree into one (8,128) tile.
            acc_ref[...] += jnp.sum(contrib.reshape(tm // 8, 8, LANES), axis=0)

        if needs_row_mask:
            row0 = block_row * tm
            is_edge = row0 + tm > rows

            @pl.when(is_edge)
            def _():
                row = lax.broadcasted_iota(jnp.int32, (tm, LANES), 0)
                # jnp.where is a select: garbage rows of the partial edge block
                # (or a clamped phantom DMA) never leak into the sum.
                accumulate(jnp.where(row0 + row < rows, loss, 0.0))

            @pl.when(jnp.logical_not(is_edge))
            def _():
                accumulate(loss)
        else:
            accumulate(loss)

    if has_phantom:
        # Phantom block (odd block count split across 2 cores): its DMA was clamped
        # to a valid tile by the index_map; skip the ~18 VALU + 4 EUP ops/elem body.
        pl.when(block_row < nblocks)(compute)
    else:
        compute()

    @pl.when(s == spc - 1)
    def _():
        # Single XLU reduction of one vreg tile per core; broadcast into the
        # lane-dense (1,8,128) output block (wrapper reads [:, 0, 0]).
        out_ref[...] = jnp.broadcast_to(jnp.sum(acc_ref[...]), out_ref.shape)


def bce_blur_with_logits_loss(pred, true, alpha=ALPHA):
    """Mean-reduced blurred BCE-with-logits loss (matches the PyTorch module)."""
    assert pred.shape == true.shape
    n = pred.size
    inv_alpha = float(1.0 / (alpha + 1e-4))

    def prep(a):
        a = jnp.ravel(a)
        if not jnp.issubdtype(a.dtype, jnp.floating):
            a = a.astype(jnp.float32)   # keep native float dtype (e.g. bf16) in HBM
        return a

    pred_f = prep(pred)
    true_f = prep(true)

    # 128-aligned prefix goes through the kernel; the <=127-element tail is summed
    # in plain JAX (no full-size jnp.pad pass over HBM).
    n_main = (n // LANES) * LANES
    tail = n - n_main

    total = jnp.float32(0.0)

    if n_main > 0:
        rows = n_main // LANES
        if tail == 0:
            pred2 = pred_f.reshape(rows, LANES)   # zero-copy reshape
            true2 = true_f.reshape(rows, LANES)
        else:
            pred2 = pred_f[:n_main].reshape(rows, LANES)
            true2 = true_f[:n_main].reshape(rows, LANES)

        # Tile height: big, but no bigger than the (8-rounded) problem.
        tm = min(TM, ((rows + 7) // 8) * 8)
        nblocks = pl.cdiv(rows, tm)
        ncores = min(_num_tensorcores(), nblocks)
        spc = pl.cdiv(nblocks, ncores)            # steps per core
        has_phantom = ncores * spc > nblocks      # only possible when ncores > 1
        needs_row_mask = (rows % tm) != 0 or has_phantom

        def in_map(c, s):
            # Clamp so a phantom block still issues an in-bounds DMA; its compute is
            # skipped in-kernel using the logical block index.
            return (jnp.minimum(c * spc + s, nblocks - 1), 0)

        tile_spec = pl.BlockSpec((tm, LANES), in_map)
        kernel = functools.partial(
            _bce_blur_kernel, rows=rows, nblocks=nblocks, tm=tm,
            inv_alpha=inv_alpha, needs_row_mask=needs_row_mask,
            has_phantom=has_phantom)

        out = pl.pallas_call(
            kernel,
            out_shape=jax.ShapeDtypeStruct((ncores, 8, LANES), jnp.float32),
            grid_spec=pltpu.PrefetchScalarGridSpec(
                num_scalar_prefetch=0,
                grid=(ncores, spc),
                in_specs=[tile_spec, tile_spec],
                out_specs=pl.BlockSpec((1, 8, LANES), lambda c, s: (c, 0, 0)),
                scratch_shapes=[pltpu.VMEM((8, LANES), jnp.float32)],
            ),
            compiler_params=pltpu.CompilerParams(
                # TODO(synk): on v7x verify "parallel" actually shards the leading
                # axis across both TensorCores; otherwise switch to CORE_PARALLEL.
                dimension_semantics=("parallel", "arbitrary"),
                vmem_limit_bytes=32 * 1024 * 1024,
            ),
        )(pred2, true2)

        total = total + jnp.sum(out[:, 0, 0])

    if tail > 0:
        xt = pred_f[n_main:].astype(jnp.float32)
        tt = true_f[n_main:].astype(jnp.float32)
        lt = jnp.maximum(xt, 0.0) - xt * tt + jnp.log1p(jnp.exp(-jnp.abs(xt)))
        pt = jax.nn.sigmoid(xt)
        af = 1.0 - jnp.exp((pt - tt - 1.0) * inv_alpha)
        total = total + jnp.sum(lt * af)

    return total * jnp.float32(1.0 / n)


def _reference(pred, true, alpha=ALPHA):
    x = pred.astype(jnp.float32)
    t = true.astype(jnp.float32)
    loss = jnp.maximum(x, 0.0) - x * t + jnp.log1p(jnp.exp(-jnp.abs(x)))
    p = jax.nn.sigmoid(x)
    alpha_factor = 1.0 - jnp.exp((p - t - 1.0) / (alpha + 1e-4))
    return jnp.mean(loss * alpha_factor)


if __name__ == "__main__":
    key = jax.random.PRNGKey(0)
    k1, k2, k3, k4 = jax.random.split(key, 4)

    # NCHW-shaped logits and 0/1 targets (e.g. detection objectness map)
    pred = jax.random.normal(k1, (2, 4, 16, 16), dtype=jnp.float32)
    true = (jax.random.uniform(k2, (2, 4, 16, 16)) > 0.5).astype(jnp.float32)

    out = jax.block_until_ready(bce_blur_with_logits_loss(pred, true))
    ref = _reference(pred, true)
    assert jnp.allclose(out, ref, atol=1e-5, rtol=1e-5), (out, ref)

    # Ragged size: exercises the lane-tail fold and the partial last row block.
    pred_r = jax.random.normal(k3, (3, 5, 7, 11), dtype=jnp.float32)
    true_r = (jax.random.uniform(k4, (3, 5, 7, 11)) > 0.5).astype(jnp.float32)
    out_r = jax.block_until_ready(bce_blur_with_logits_loss(pred_r, true_r))
    ref_r = _reference(pred_r, true_r)
    assert jnp.allclose(out_r, ref_r, atol=1e-5, rtol=1e-5), (out_r, ref_r)

    print("KERNEL_OK")
</pallas_src>

<mosaic_0001>
module attributes {stable_mosaic.version = 11 : i64} {
  func.func @_bce_blur_kernel(%arg0: i32, %arg1: i32, %arg2: memref<16x128xf32, #tpu.memory_space<vmem>>, %arg3: memref<16x128xf32, #tpu.memory_space<vmem>>, %arg4: memref<1x8x128xf32, #tpu.memory_space<vmem>>, %arg5: memref<8x128xf32, #tpu.memory_space<vmem>>) attributes {dimension_semantics = [#tpu.dimension_semantics<parallel>, #tpu.dimension_semantics<arbitrary>], iteration_bounds = array<i64: 1, 1>, scalar_prefetch = 0 : i64, scratch_operands = 1 : i64, tpu.core_type = #tpu.core_type<tc>, window_params = [{transform_indices = @transform_0, window_bounds = array<i64: 16, 128>}, {transform_indices = @transform_1, window_bounds = array<i64: 16, 128>}, {transform_indices = @transform_2, window_bounds = array<i64: 1, 8, 128>}]} {
    %c0_i32 = arith.constant 0 : i32
    %0 = arith.cmpi eq, %arg1, %c0_i32 : i32
    %1 = arith.extui %0 : i1 to i32
    %c0_i32_0 = arith.constant 0 : i32
    %2 = arith.cmpi ne, %1, %c0_i32_0 : i32
    scf.if %2 {
      %cst_18 = arith.constant 0.000000e+00 : f32
      %40 = vector.broadcast %cst_18 : f32 to vector<8x128xf32>
      %c0_19 = arith.constant 0 : index
      %c0_20 = arith.constant 0 : index
      %41 = vector.load %arg5[%c0_19, %c0_20] : memref<8x128xf32, #tpu.memory_space<vmem>>, vector<8x128xf32>
      tpu.vector_store %arg5[%c0_19, %c0_20], %40 {strides = array<i32>} : memref<8x128xf32, #tpu.memory_space<vmem>>, vector<8x128xf32>,
    } else {
    }
    %c0 = arith.constant 0 : index
    %c0_1 = arith.constant 0 : index
    %3 = vector.load %arg2[%c0, %c0_1] : memref<16x128xf32, #tpu.memory_space<vmem>>, vector<16x128xf32>
    %c0_2 = arith.constant 0 : index
    %c0_3 = arith.constant 0 : index
    %4 = vector.load %arg3[%c0_2, %c0_3] : memref<16x128xf32, #tpu.memory_space<vmem>>, vector<16x128xf32>
    %5 = math.absf %3 : vector<16x128xf32>
    %cst = arith.constant 0.000000e+00 : f32
    %6 = vector.broadcast %cst : f32 to vector<16x128xf32>
    %7 = arith.subf %6, %5 : vector<16x128xf32>
    %8 = math.exp %7 : vector<16x128xf32>
    %cst_4 = arith.constant 0.000000e+00 : f32
    %9 = vector.broadcast %cst_4 : f32 to vector<16x128xf32>
    %10 = arith.maximumf %3, %9 : vector<16x128xf32>
    %11 = arith.mulf %3, %4 : vector<16x128xf32>
    %12 = arith.subf %10, %11 : vector<16x128xf32>
    %13 = math.log1p %8 : vector<16x128xf32>
    %14 = arith.addf %12, %13 : vector<16x128xf32>
    %cst_5 = arith.constant 1.000000e+00 : f32
    %15 = vector.broadcast %cst_5 : f32 to vector<16x128xf32>
    %16 = arith.addf %15, %8 : vector<16x128xf32>
    %cst_6 = arith.constant 1.000000e+00 : f32
    %17 = vector.broadcast %cst_6 : f32 to vector<16x128xf32>
    %18 = arith.divf %17, %16 : vector<16x128xf32>
    %cst_7 = arith.constant 0.000000e+00 : f32
    %19 = vector.broadcast %cst_7 : f32 to vector<16x128xf32>
    %20 = arith.cmpf oge, %3, %19 : vector<16x128xf32>
    %21 = arith.mulf %8, %18 : vector<16x128xf32>
    %22 = arith.select %20, %18, %21 : vector<16x128xi1>, vector<16x128xf32>
    %23 = arith.subf %22, %4 : vector<16x128xf32>
    %cst_8 = arith.constant 1.000000e+00 : f32
    %24 = vector.broadcast %cst_8 : f32 to vector<16x128xf32>
    %25 = arith.subf %23, %24 : vector<16x128xf32>
    %cst_9 = arith.constant 19.9600792 : f32
    %26 = vector.broadcast %cst_9 : f32 to vector<16x128xf32>
    %27 = arith.mulf %25, %26 : vector<16x128xf32>
    %28 = math.exp %27 : vector<16x128xf32>
    %cst_10 = arith.constant 1.000000e+00 : f32
    %29 = vector.broadcast %cst_10 : f32 to vector<16x128xf32>
    %30 = arith.subf %29, %28 : vector<16x128xf32>
    %31 = arith.mulf %14, %30 : vector<16x128xf32>
    %c0_11 = arith.constant 0 : index
    %c0_12 = arith.constant 0 : index
    %32 = vector.load %arg5[%c0_11, %c0_12] : memref<8x128xf32, #tpu.memory_space<vmem>>, vector<8x128xf32>
    %33 = vector.shape_cast %31 : vector<16x128xf32> to vector<2x8x128xf32>
    %cst_13 = arith.constant dense<0.000000e+00> : vector<8x128xf32>
    %34 = vector.multi_reduction <add>, %33, %cst_13 [0] : vector<2x8x128xf32> to vector<8x128xf32>
    %35 = arith.addf %32, %34 : vector<8x128xf32>
    %c0_14 = arith.constant 0 : index
    %c0_15 = arith.constant 0 : index
    %36 = vector.load %arg5[%c0_14, %c0_15] : memref<8x128xf32, #tpu.memory_space<vmem>>, vector<8x128xf32>
    tpu.vector_store %arg5[%c0_14, %c0_15], %35 {strides = array<i32>} : memref<8x128xf32, #tpu.memory_space<vmem>>, vector<8x128xf32>,
    %c0_i32_16 = arith.constant 0 : i32
    %37 = arith.cmpi eq, %arg1, %c0_i32_16 : i32
    %38 = arith.extui %37 : i1 to i32
    %c0_i32_17 = arith.constant 0 : i32
    %39 = arith.cmpi ne, %38, %c0_i32_17 : i32
    scf.if %39 {
      %c0_18 = arith.constant 0 : index
      %c0_19 = arith.constant 0 : index
      %40 = vector.load %arg5[%c0_18, %c0_19] : memref<8x128xf32, #tpu.memory_space<vmem>>, vector<8x128xf32>
      %41 = vector.shape_cast %40 : vector<8x128xf32> to vector<1x8x128xf32>
      %cst_20 = arith.constant dense<0.000000e+00> : vector<1xf32>
      %42 = vector.multi_reduction <add>, %41, %cst_20 [1, 2] : vector<1x8x128xf32> to vector<1xf32>
      %43 = vector.shape_cast %42 : vector<1xf32> to vector<1x1x1xf32>
      %44 = vector.extract %43[0, 0, 0] : f32 from vector<1x1x1xf32>
      %45 = vector.broadcast %44 : f32 to vector<1x8x128xf32>
      %c0_21 = arith.constant 0 : index
      %c0_22 = arith.constant 0 : index
      %c0_23 = arith.constant 0 : index
      %46 = vector.load %arg4[%c0_21, %c0_22, %c0_23] : memref<1x8x128xf32, #tpu.memory_space<vmem>>, vector<1x8x128xf32>
      tpu.vector_store %arg4[%c0_21, %c0_22, %c0_23], %45 {strides = array<i32>} : memref<1x8x128xf32, #tpu.memory_space<vmem>>, vector<1x8x128xf32>,
    } else {
    }
    return
  }
  func.func @transform_0(%arg0: i32, %arg1: i32) -> (i32, i32) {
    %c1_i32 = arith.constant 1 : i32
    %0 = arith.muli %arg0, %c1_i32 : i32
    %1 = arith.addi %0, %arg1 : i32
    %c0_i32 = arith.constant 0 : i32
    %2 = arith.minsi %1, %c0_i32 : i32
    %c0_i32_0 = arith.constant 0 : i32
    %c0_i32_1 = arith.constant 0 : i32
    return %2, %c0_i32_0 : i32, i32
  }
  func.func @transform_1(%arg0: i32, %arg1: i32) -> (i32, i32) {
    %c1_i32 = arith.constant 1 : i32
    %0 = arith.muli %arg0, %c1_i32 : i32
    %1 = arith.addi %0, %arg1 : i32
    %c0_i32 = arith.constant 0 : i32
    %2 = arith.minsi %1, %c0_i32 : i32
    %c0_i32_0 = arith.constant 0 : i32
    %c0_i32_1 = arith.constant 0 : i32
    return %2, %c0_i32_0 : i32, i32
  }
  func.func @transform_2(%arg0: i32, %arg1: i32) -> (i32, i32, i32) {
    %c0_i32 = arith.constant 0 : i32
    %c0_i32_0 = arith.constant 0 : i32
    %c0_i32_1 = arith.constant 0 : i32
    return %arg0, %c0_i32, %c0_i32_0 : i32, i32, i32
  }
}

</mosaic_0001>

<llo_original>
// kernel: tpu_custom_call.1
$region0: #{tpu_custom_call.1}
  #allocation0 [shape = 'u32[]', space=smem, size = 0x4, offset = 0x4, fixed_abs, tag = 'smem constant byte address 0x4 - core index']
  #allocation1 [shape = 'u32[144,128]{1,0:T(1,128)}', space=vmem, size = 0x12000, scoped, tag = 'internal scratch']
  #allocation2 [shape = 'f32[8,128]{1,0:T(8,128)}', space=vmem, size = 0x1000, scoped, tag = 'scratch operand']
  %s0 = inlined_call_operand.hbm [shape: f32[16,128], index: 0, kind: input, shape index: {}]
  %s1 = inlined_call_operand.hbm [shape: f32[16,128], index: 1, kind: input, shape index: {}]
  %s2 = inlined_call_operand.hbm [shape: f32[1,8,128], index: 2, kind: output, shape index: {}]
  %s3 = sld [smem:[#allocation0]]
  $region34: #{tpu_custom_call.1} parent=0
    _
  %s5 = ssub.s32 1, %s3
  %s6 = scalar_select 0, %s5, %s3
  $region1: #{tpu_custom_call.1} parent=0
    #allocation3 [shape = 'u8[8192]{0}', space=vmem, size = 0x2000, scoped, tag = 'input window, operand 0, single buffered']
    #allocation4 [shape = 's32[1]{0}', space=sflag, size = 0x4, scoped, tag = 'scoped memory for tpu_custom_call.1']
    #allocation5 [shape = 's32[1]{0}', space=sflag, size = 0x4, scoped, tag = 'scoped memory for tpu_custom_call.1']
    #allocation6 [shape = 'u8[8192]{0}', space=vmem, size = 0x2000, scoped, tag = 'input window, operand 1, single buffered']
    #allocation7 [shape = 's32[1]{0}', space=sflag, size = 0x4, scoped, tag = 'scoped memory for tpu_custom_call.1']
    #allocation8 [shape = 'u8[4096]{0}', space=vmem, size = 0x1000, scoped, tag = 'output window, operand 0, single buffered']
    %7 = vsyncpa [#allocation4], 0
    %8 = vsyncpa [#allocation7], 0
    %9 = vsyncpa [#allocation5], 0
    // Predicated region
    $region2: #{tpu_custom_call.1} parent=1 // pred_check
      _
    $region3: #{tpu_custom_call.1} parent=1 // pred_check_branch
      %11 = sbr.rel (0) target = $region5
    $region4: #{tpu_custom_call.1} parent=1 // pred_region
      %s12 = sadd.s32 0, 0
      %p13 = scmp.lt.s32.totalorder %s12, 0
      %s14 = scalar_select %p13, %s12, 0
      %s15 = smul.u32 2, %s14
      %s17 = ssub.s32 256, 256
      %18 = vsyncadd [#allocation4], %s17
      %s19 = smul.addr %s15, 128
      %s20 = scalar_lea.hbm %s0, %s19
      %s21 = sshll.u32 [#allocation3], 4
      %s22 = int_to_ptr.vmem [resolvable:$true] %s21
      %27 = dma.hbm_to_vmem [thread:$0]  %s20, 256, %s22, [#allocation4], 128, 128, 8
    $region5: #{tpu_custom_call.1} parent=1 // pred_fallthru
      _
    // Predicated region
    $region6: #{tpu_custom_call.1} parent=1 // pred_check
      _
    $region7: #{tpu_custom_call.1} parent=1 // pred_check_branch
      %29 = sbr.rel (0) target = $region9
    $region8: #{tpu_custom_call.1} parent=1 // pred_region
      %s30 = sadd.s32 0, 0
      %p31 = scmp.lt.s32.totalorder %s30, 0
      %s32 = scalar_select %p31, %s30, 0
      %s33 = smul.u32 2, %s32
      %s35 = ssub.s32 256, 256
      %36 = vsyncadd [#allocation7], %s35
      %s37 = smul.addr %s33, 128
      %s38 = scalar_lea.hbm %s1, %s37
      %s39 = sshll.u32 [#allocation6], 4
      %s40 = int_to_ptr.vmem [resolvable:$true] %s39
      %45 = dma.hbm_to_vmem [thread:$0]  %s38, 256, %s40, [#allocation7], 128, 128, 8
    $region9: #{tpu_custom_call.1} parent=1 // pred_fallthru
      _
    // Predicated region
    $region10: #{tpu_custom_call.1} parent=1 // pred_check
      _
    $region11: #{tpu_custom_call.1} parent=1 // pred_check_branch
      %47 = sbr.rel (0) target = $region13
    $region12: #{tpu_custom_call.1} parent=1 // pred_region
      %48 = dma.done [#allocation4], 256
    $region13: #{tpu_custom_call.1} parent=1 // pred_fallthru
      _
    // Predicated region
    $region14: #{tpu_custom_call.1} parent=1 // pred_check
      _
    $region15: #{tpu_custom_call.1} parent=1 // pred_check_branch
      %50 = sbr.rel (0) target = $region17
    $region16: #{tpu_custom_call.1} parent=1 // pred_region
      %51 = dma.done [#allocation7], 256
    $region17: #{tpu_custom_call.1} parent=1 // pred_fallthru
      _
    %s52 = sadd.s32 0, 0
    %p53 = scmp.lt.s32.totalorder %s52, 0
    %s54 = scalar_select %p53, %s52, 0
    %s55 = smul.u32 2, %s54
    %s56 = sadd.s32 0, 0
    %p57 = scmp.lt.s32.totalorder %s56, 0
    %s58 = scalar_select %p57, %s56, 0
    %s59 = smul.u32 2, %s58
    %p60 = scmp.eq.s32.totalorder 0, 0
    // Predicated region
    $region18: #{tpu_custom_call.1} parent=1 // pred_check
      %p61 = pneg %p60
    $region19: #{tpu_custom_call.1} parent=1 // pred_check_branch
      %63 = sbr.rel (%p61) target = $region21
    $region20: #{tpu_custom_call.1} parent=1 // pred_region
      %64 = vst [vmem:[#allocation2] sm:$0xff] 0.0
    $region21: #{tpu_custom_call.1} parent=1 // pred_fallthru
      _
    %v65 = vld [vmem:[#allocation3] sm:$0xff]
    %v66 = vld [vmem:[#allocation3 + $0x8] sm:$0xff]
    %v67 = vld [vmem:[#allocation6] sm:$0xff]
    %v68 = vld [vmem:[#allocation6 + $0x8] sm:$0xff]
    %v69 = vand.u32 2147483647, %v65
    %v70 = vand.u32 2147483647, %v66
    %v71 = vsub.f32 0.0, %v69
    %v72 = vsub.f32 0.0, %v70
    %v73 = vmul.f32 %v71, 1.442695
    %v74 = vpow.pop %v73
    %v75 = vmul.f32 %v72, 1.442695
    %v76 = vpow.pop %v75
    %v77 = vmax.f32 %v65, 0.0
    %v78 = vmax.f32 %v66, 0.0
    %v79 = vmul.f32 %v65, %v67
    %v80 = vmul.f32 %v66, %v68
    %v81 = vsub.f32 %v77, %v79
    %v82 = vsub.f32 %v78, %v80
    %v83 = vadd.f32 %v74, 1.0
    %v84 = vlog2.pop %v83
    %v85 = vmul.f32 %v84, 0.6931472
    %v86 = vmul.f32 -0.5, %v74
    %v87 = vadd.f32 %v86, 1.0
    %v88 = vmul.f32 %v87, %v74
    %v89 = vand.u32 2147483647, %v74
    %vm90 = vcmp.lt.f32.partialorder %v89, 0.0004427343
    %v91 = vsel %vm90, %v88, %v85
    %v92 = vadd.f32 %v76, 1.0
    %v93 = vlog2.pop %v92
    %v94 = vmul.f32 %v93, 0.6931472
    %v95 = vmul.f32 -0.5, %v76
    %v96 = vadd.f32 %v95, 1.0
    %v97 = vmul.f32 %v96, %v76
    %v98 = vand.u32 2147483647, %v76
    %vm99 = vcmp.lt.f32.partialorder %v98, 0.0004427343
    %v100 = vsel %vm99, %v97, %v94
    %v101 = vadd.f32 %v81, %v91
    %v102 = vadd.f32 %v82, %v100
    %v103 = vadd.f32 %v74, 1.0
    %v104 = vadd.f32 %v76, 1.0
    %v105 = vrcp.pop %v103
    %v106 = vmul.f32 1.0, %v105
    %v107 = vrcp.pop %v104
    %v108 = vmul.f32 1.0, %v107
    %vm109 = vcmp.ge.f32.partialorder %v65, 0.0
    %vm110 = vcmp.ge.f32.partialorder %v66, 0.0
    %v111 = vmul.f32 %v74, %v106
    %v112 = vmul.f32 %v76, %v108
    %v113 = vsel %vm109, %v106, %v111
    %v114 = vsel %vm110, %v108, %v112
    %v115 = vsub.f32 %v113, %v67
    %v116 = vsub.f32 %v114, %v68
    %v117 = vsub.f32 %v115, 1.0
    %v118 = vsub.f32 %v116, 1.0
    %v119 = vmul.f32 %v117, 19.96008
    %v120 = vmul.f32 %v118, 19.96008
    %v121 = vmul.f32 %v119, 1.442695
    %v122 = vpow.pop %v121
    %v123 = vmul.f32 %v120, 1.442695
    %v124 = vpow.pop %v123
    %v125 = vsub.f32 1.0, %v122
    %v126 = vsub.f32 1.0, %v124
    %v127 = vmul.f32 %v101, %v125
    %v128 = vmul.f32 %v102, %v126
    %v129 = vld [vmem:[#allocation2] sm:$0xff]
    %v130 = vadd.f32 %v127, %v128
    %v131 = vadd.f32 %v129, %v130
    %132 = vst [vmem:[#allocation2] sm:$0xff] %v131
    // Predicated region
    $region22: #{tpu_custom_call.1} parent=1 // pred_check
      %p133 = pneg %p60
    $region23: #{tpu_custom_call.1} parent=1 // pred_check_branch
      %135 = sbr.rel (%p133) target = $region25
    $region24: #{tpu_custom_call.1} parent=1 // pred_region
      %v136 = vld [vmem:[#allocation2] sm:$0xff]
      %137 = vadd.xlane.f32.xlu0 %v136
      %v138 = vpop.xlane.xlu0 %137
      %v139 = vrot.slane %v138, 4
      %v140 = vadd.f32 %v138, %v139
      %v141 = vrot.slane %v140, 2
      %v142 = vadd.f32 %v140, %v141
      %v143 = vrot.slane %v142, 1
      %v144 = vadd.f32 %v142, %v143
      %s145 = vtos %v144
      %v146 = vstv %s145
      %147 = vst [vmem:[#allocation8] sm:$0xff] %v146
    $region25: #{tpu_custom_call.1} parent=1 // pred_fallthru
      _
    // Predicated region
    $region26: #{tpu_custom_call.1} parent=1 // pred_check
      _
    $region27: #{tpu_custom_call.1} parent=1 // pred_check_branch
      %149 = sbr.rel (0) target = $region29
    $region28: #{tpu_custom_call.1} parent=1 // pred_region
      %s151 = ssub.s32 128, 128
      %152 = vsyncadd [#allocation5], %s151
      %s154 = sshll.u32 [#allocation8], 4
      %s155 = int_to_ptr.vmem [resolvable:$true] %s154
      %157 = dma.vmem_to_hbm [thread:$0]  %s155, 128, %s2, [#allocation5]
    $region29: #{tpu_custom_call.1} parent=1 // pred_fallthru
      _
    // Predicated region
    $region30: #{tpu_custom_call.1} parent=1 // pred_check
      _
    $region31: #{tpu_custom_call.1} parent=1 // pred_check_branch
      %159 = sbr.rel (0) target = $region33
    $region32: #{tpu_custom_call.1} parent=1 // pred_region
      %160 = dma.done [#allocation5], 128
    $region33: #{tpu_custom_call.1} parent=1 // pred_fallthru
      _
    %161 = vsyncpa [#allocation4], 1
    %162 = vsyncpa [#allocation7], 1
    %163 = vsyncpa [#allocation5], 1

</llo_original>
